<compile_context>
chip_gen: v7x
topology: tpu7x:2x2x1
jax: 0.10.0
libtpu: 0.0.40
codegen_flags: <defaults>
</compile_context>

<pallas_src>
import functools

import jax
import jax.numpy as jnp
from jax.experimental import pallas as pl
from jax.experimental.pallas import tpu as pltpu

BN_EPS = 1e-5


def _convblock_kernel(p_ref, w_ref, gb_ref, o_ref):
    # p_ref : (M, K_pad)    im2col patches (zero-padded along K)
    # w_ref : (K_pad, Cout) conv weights, tap-major / channel-minor (zero-padded along K)
    # gb_ref: (8, Cout)     row 0 = BN gamma, row 1 = BN beta (rows 2..7 unused pad)
    # o_ref : (M, Cout)
    M = p_ref.shape[0]

    # --- conv: one MXU matmul, f32 accumulation ---
    acc = jnp.dot(p_ref[...], w_ref[...], preferred_element_type=jnp.float32)   # (M, Cout)

    # --- training-mode batch norm statistics (biased variance over the M = N*H*W rows) ---
    inv_cnt = 1.0 / M
    mean = jnp.sum(acc, axis=0, keepdims=True) * inv_cnt                         # (1, Cout)
    centered = acc - mean
    var = jnp.sum(centered * centered, axis=0, keepdims=True) * inv_cnt          # (1, Cout)
    inv_std = jax.lax.rsqrt(var + BN_EPS)

    # --- fold BN affine into per-channel scale/shift; epilogue = mul + add + max ---
    gamma = gb_ref[0:1, :]
    beta = gb_ref[1:2, :]
    s = gamma * inv_std                                                          # (1, Cout)
    o_ref[...] = jnp.maximum(centered * s + beta, 0.0).astype(o_ref.dtype)


@functools.partial(jax.jit, static_argnames=())
def conv_block_forward(x_nchw, w_oihw, bias, gamma, beta):
    """x_nchw: (N, Cin, H, W) f32 -> (N, Cout, H, W) f32 (Conv2d + train-mode BN + ReLU).

    `bias` is accepted for parity with nn.Conv2d but unused: a per-channel constant added before
    training-mode BatchNorm cancels exactly in the mean subtraction.
    """
    del bias
    N, Cin, H, W = x_nchw.shape
    Cout, _, kh, kw = w_oihw.shape
    M = N * H * W
    K = kh * kw * Cin
    K_pad = max(128, ((K + 127) // 128) * 128)

    # im2col in the wrapper (XLA fuses transpose/pad/slice/concat into one producing fusion).
    x_nhwc = jnp.transpose(x_nchw, (0, 2, 3, 1))                   # (N, H, W, Cin)
    x_sp = jnp.pad(x_nhwc, ((0, 0), (1, 1), (1, 1), (0, 0)))       # conv padding = 1
    taps = [x_sp[:, dy:dy + H, dx:dx + W, :] for dy in range(kh) for dx in range(kw)]
    patches = jnp.concatenate(taps, axis=-1).reshape(M, K)         # feature idx = (dy*kw+dx)*Cin+c
    patches = jnp.pad(patches, ((0, 0), (0, K_pad - K)))           # (M, K_pad)

    # OIHW -> (kh*kw*Cin, Cout), same tap-major / channel-minor ordering as the patches.
    w_flat = jnp.transpose(w_oihw, (2, 3, 1, 0)).reshape(K, Cout)
    w_flat = jnp.pad(w_flat, ((0, K_pad - K), (0, 0)))             # (K_pad, Cout)

    # Pack gamma/beta into one (8, Cout) tile: one DMA instead of several sub-tile inputs.
    gb = jnp.zeros((8, Cout), jnp.float32).at[0].set(gamma).at[1].set(beta)

    vmem = pl.BlockSpec(memory_space=pltpu.MemorySpace.VMEM)
    cost = pl.CostEstimate(
        flops=2 * M * K_pad * Cout,
        transcendentals=0,
        bytes_accessed=4 * (M * K_pad + K_pad * Cout + 8 * Cout + M * Cout),
    )
    out_2d = pl.pallas_call(
        _convblock_kernel,
        out_shape=jax.ShapeDtypeStruct((M, Cout), jnp.float32),
        in_specs=[vmem, vmem, vmem],
        out_specs=vmem,
        cost_estimate=cost,
    )(patches, w_flat, gb)

    # Lane-dense (M, Cout) -> NCHW to match the PyTorch module's output convention.
    return jnp.transpose(out_2d.reshape(N, H, W, Cout), (0, 3, 1, 2))


def _reference(x_nchw, w_oihw, bias, gamma, beta):
    """Pure-JAX reference of Conv2d(+bias) + training-mode BatchNorm2d + ReLU."""
    conv = jax.lax.conv_general_dilated(
        x_nchw, w_oihw, window_strides=(1, 1), padding=((1, 1), (1, 1)),
        dimension_numbers=("NCHW", "OIHW", "NCHW"))
    conv = conv + bias[None, :, None, None]
    mean = jnp.mean(conv, axis=(0, 2, 3), keepdims=True)
    var = jnp.mean((conv - mean) ** 2, axis=(0, 2, 3), keepdims=True)
    y = (conv - mean) * jax.lax.rsqrt(var + BN_EPS)
    y = y * gamma[None, :, None, None] + beta[None, :, None, None]
    return jnp.maximum(y, 0.0)


if __name__ == "__main__":
    # Small shapes consistent with the module: inplanes=7, planes=128, 8x8 board, batch=2.
    N, Cin, H, W = 2, 7, 8, 8
    Cout = 128

    key = jax.random.PRNGKey(0)
    kx, kw, kb = jax.random.split(key, 3)

    x = jax.random.normal(kx, (N, Cin, H, W), jnp.float32)
    # Deterministic synthetic parameters (shapes from nn.Conv2d / nn.BatchNorm2d __init__).
    w = jax.random.normal(kw, (Cout, Cin, 3, 3), jnp.float32) * 0.1   # OIHW
    b = jax.random.normal(kb, (Cout,), jnp.float32) * 0.1
    gamma = jnp.ones((Cout,), jnp.float32)   # BatchNorm2d default init
    beta = jnp.zeros((Cout,), jnp.float32)

    out = conv_block_forward(x, w, b, gamma, beta)
    out = jax.block_until_ready(out)

    ref = _reference(x, w, b, gamma, beta)
    assert out.shape == (N, Cout, H, W)
    assert jnp.allclose(out, ref, rtol=1e-3, atol=1e-3), "mismatch vs reference"

    print("KERNEL_OK")
</pallas_src>

<mosaic_0001>
module attributes {stable_mosaic.version = 11 : i64} {
  func.func @_convblock_kernel(%arg0: memref<128x128xf32, #tpu.memory_space<vmem>>, %arg1: memref<128x128xf32, #tpu.memory_space<vmem>>, %arg2: memref<8x128xf32, #tpu.memory_space<vmem>>, %arg3: memref<128x128xf32, #tpu.memory_space<vmem>>) attributes {dimension_semantics = [], scalar_prefetch = 0 : i64, scratch_operands = 0 : i64, tpu.core_type = #tpu.core_type<tc>} {
    %c0 = arith.constant 0 : index
    %c0_0 = arith.constant 0 : index
    %0 = vector.load %arg0[%c0, %c0_0] : memref<128x128xf32, #tpu.memory_space<vmem>>, vector<128x128xf32>
    %c0_1 = arith.constant 0 : index
    %c0_2 = arith.constant 0 : index
    %1 = vector.load %arg1[%c0_1, %c0_2] : memref<128x128xf32, #tpu.memory_space<vmem>>, vector<128x128xf32>
    %cst = arith.constant dense<0.000000e+00> : vector<128x128xf32>
    %2 = tpu.matmul %0, %1, %cst {dimension_numbers = #tpu.dot_dimension_numbers<[1], [0], [0], [1], [0, 0, 1, 1], [], []>} : vector<128x128xf32>, vector<128x128xf32>, vector<128x128xf32> -> vector<128x128xf32>
    %cst_3 = arith.constant dense<0.000000e+00> : vector<128xf32>
    %3 = vector.multi_reduction <add>, %2, %cst_3 [0] : vector<128x128xf32> to vector<128xf32>
    %4 = vector.shape_cast %3 : vector<128xf32> to vector<1x128xf32>
    %cst_4 = arith.constant 7.812500e-03 : f32
    %5 = vector.broadcast %cst_4 : f32 to vector<1x128xf32>
    %6 = arith.mulf %4, %5 : vector<1x128xf32>
    %7 = vector.broadcast %6 : vector<1x128xf32> to vector<128x128xf32>
    %8 = arith.subf %2, %7 : vector<128x128xf32>
    %9 = arith.mulf %8, %8 : vector<128x128xf32>
    %cst_5 = arith.constant dense<0.000000e+00> : vector<128xf32>
    %10 = vector.multi_reduction <add>, %9, %cst_5 [0] : vector<128x128xf32> to vector<128xf32>
    %11 = vector.shape_cast %10 : vector<128xf32> to vector<1x128xf32>
    %cst_6 = arith.constant 7.812500e-03 : f32
    %12 = vector.broadcast %cst_6 : f32 to vector<1x128xf32>
    %13 = arith.mulf %11, %12 : vector<1x128xf32>
    %cst_7 = arith.constant 9.99999974E-6 : f32
    %14 = vector.broadcast %cst_7 : f32 to vector<1x128xf32>
    %15 = arith.addf %13, %14 : vector<1x128xf32>
    %16 = math.rsqrt %15 : vector<1x128xf32>
    %c0_8 = arith.constant 0 : index
    %c0_9 = arith.constant 0 : index
    %17 = vector.load %arg2[%c0_8, %c0_9] : memref<8x128xf32, #tpu.memory_space<vmem>>, vector<1x128xf32>
    %c1 = arith.constant 1 : index
    %c0_10 = arith.constant 0 : index
    %18 = vector.load %arg2[%c1, %c0_10] : memref<8x128xf32, #tpu.memory_space<vmem>>, vector<1x128xf32>
    %19 = arith.mulf %17, %16 : vector<1x128xf32>
    %20 = vector.broadcast %19 : vector<1x128xf32> to vector<128x128xf32>
    %21 = arith.mulf %8, %20 : vector<128x128xf32>
    %22 = vector.broadcast %18 : vector<1x128xf32> to vector<128x128xf32>
    %23 = arith.addf %21, %22 : vector<128x128xf32>
    %cst_11 = arith.constant 0.000000e+00 : f32
    %24 = vector.broadcast %cst_11 : f32 to vector<128x128xf32>
    %25 = arith.maximumf %23, %24 : vector<128x128xf32>
    %c0_12 = arith.constant 0 : index
    %c0_13 = arith.constant 0 : index
    %26 = vector.load %arg3[%c0_12, %c0_13] : memref<128x128xf32, #tpu.memory_space<vmem>>, vector<128x128xf32>
    tpu.vector_store %arg3[%c0_12, %c0_13], %25 {strides = array<i32>} : memref<128x128xf32, #tpu.memory_space<vmem>>, vector<128x128xf32>,
    return
  }
}

</mosaic_0001>

<llo_original>
// kernel: conv_block_forward.1
$region0: #{conv_block_forward.1}
  #allocation0 [shape = 'u32[]', space=smem, size = 0x4, offset = 0x4, fixed_abs, tag = 'smem constant byte address 0x4 - core index']
  #allocation1 [shape = 'u32[144,128]{1,0:T(1,128)}', space=vmem, size = 0x12000, scoped, tag = 'internal scratch']
  %s0 = inlined_call_operand.vmem [shape: f32[128,128], index: 0, kind: input, shape index: {}]
  %s1 = inlined_call_operand.vmem [shape: f32[128,128], index: 1, kind: input, shape index: {}]
  %s2 = inlined_call_operand.vmem [shape: f32[8,128], index: 2, kind: input, shape index: {}]
  %s3 = inlined_call_operand.hbm [shape: f32[128,128], index: 3, kind: output, shape index: {}]
  %s4 = sld [smem:[#allocation0]]
  $region22: #{conv_block_forward.1} parent=0
    _
  %s6 = ssub.s32 1, %s4
  %s7 = scalar_select 0, %s6, %s4
  $region1: #{conv_block_forward.1} parent=0
    #allocation2 [shape = 'u8[65536]{0}', space=vmem, size = 0x10000, scoped, tag = 'output window, operand 0, single buffered']
    #allocation3 [shape = 's32[1]{0}', space=sflag, size = 0x4, scoped, tag = 'scoped memory for conv_block_forward.1']
    %8 = vsyncpa [#allocation3], 0
    // Predicated region
    $region2: #{conv_block_forward.1} parent=1 // pred_check
      _
    $region3: #{conv_block_forward.1} parent=1 // pred_check_branch
      %10 = sbr.rel (0) target = $region5
    $region4: #{conv_block_forward.1} parent=1 // pred_region
      _
    $region5: #{conv_block_forward.1} parent=1 // pred_fallthru
      _
    // Predicated region
    $region6: #{conv_block_forward.1} parent=1 // pred_check
      _
    $region7: #{conv_block_forward.1} parent=1 // pred_check_branch
      %12 = sbr.rel (0) target = $region9
    $region8: #{conv_block_forward.1} parent=1 // pred_region
      _
    $region9: #{conv_block_forward.1} parent=1 // pred_fallthru
      _
    // Predicated region
    $region10: #{conv_block_forward.1} parent=1 // pred_check
      _
    $region11: #{conv_block_forward.1} parent=1 // pred_check_branch
      %14 = sbr.rel (0) target = $region13
    $region12: #{conv_block_forward.1} parent=1 // pred_region
      _
    $region13: #{conv_block_forward.1} parent=1 // pred_fallthru
      _
    %v15 = vld [vmem:[%s0] sm:$0xff]
    %v16 = vld [vmem:[%s0 + $0x8] sm:$0xff]
    %v17 = vld [vmem:[%s0 + $0x10] sm:$0xff]
    %v18 = vld [vmem:[%s0 + $0x18] sm:$0xff]
    %v19 = vld [vmem:[%s0 + $0x20] sm:$0xff]
    %v20 = vld [vmem:[%s0 + $0x28] sm:$0xff]
    %v21 = vld [vmem:[%s0 + $0x30] sm:$0xff]
    %v22 = vld [vmem:[%s0 + $0x38] sm:$0xff]
    %v23 = vld [vmem:[%s0 + $0x40] sm:$0xff]
    %v24 = vld [vmem:[%s0 + $0x48] sm:$0xff]
    %v25 = vld [vmem:[%s0 + $0x50] sm:$0xff]
    %v26 = vld [vmem:[%s0 + $0x58] sm:$0xff]
    %v27 = vld [vmem:[%s0 + $0x60] sm:$0xff]
    %v28 = vld [vmem:[%s0 + $0x68] sm:$0xff]
    %v29 = vld [vmem:[%s0 + $0x70] sm:$0xff]
    %v30 = vld [vmem:[%s0 + $0x78] sm:$0xff]
    %v31 = vld [vmem:[%s1] sm:$0xff]
    %v32 = vld [vmem:[%s1 + $0x8] sm:$0xff]
    %v33 = vld [vmem:[%s1 + $0x10] sm:$0xff]
    %v34 = vld [vmem:[%s1 + $0x18] sm:$0xff]
    %v35 = vld [vmem:[%s1 + $0x20] sm:$0xff]
    %v36 = vld [vmem:[%s1 + $0x28] sm:$0xff]
    %v37 = vld [vmem:[%s1 + $0x30] sm:$0xff]
    %v38 = vld [vmem:[%s1 + $0x38] sm:$0xff]
    %v39 = vld [vmem:[%s1 + $0x40] sm:$0xff]
    %v40 = vld [vmem:[%s1 + $0x48] sm:$0xff]
    %v41 = vld [vmem:[%s1 + $0x50] sm:$0xff]
    %v42 = vld [vmem:[%s1 + $0x58] sm:$0xff]
    %v43 = vld [vmem:[%s1 + $0x60] sm:$0xff]
    %v44 = vld [vmem:[%s1 + $0x68] sm:$0xff]
    %v45 = vld [vmem:[%s1 + $0x70] sm:$0xff]
    %v46 = vld [vmem:[%s1 + $0x78] sm:$0xff]
    %47 = vmatprep.subr.mxu0 0.0
    %48 = vmatpush1.msra.mxu0 %v31
    %49 = vmatprep.subr.mxu0 0.0
    %50 = vmatpush1.msra.mxu0 %v32
    %51 = vmatprep.subr.mxu0 0.0
    %52 = vmatpush1.msra.mxu0 %v33
    %53 = vmatprep.subr.mxu0 0.0
    %54 = vmatpush1.msra.mxu0 %v34
    %55 = vmatprep.subr.mxu0 0.0
    %56 = vmatpush1.msra.mxu0 %v35
    %57 = vmatprep.subr.mxu0 0.0
    %58 = vmatpush1.msra.mxu0 %v36
    %59 = vmatprep.subr.mxu0 0.0
    %60 = vmatpush1.msra.mxu0 %v37
    %61 = vmatprep.subr.mxu0 0.0
    %62 = vmatpush1.msra.mxu0 %v38
    %63 = vmatprep.subr.mxu0 0.0
    %64 = vmatpush1.msra.mxu0 %v39
    %65 = vmatprep.subr.mxu0 0.0
    %66 = vmatpush1.msra.mxu0 %v40
    %67 = vmatprep.subr.mxu0 0.0
    %68 = vmatpush1.msra.mxu0 %v41
    %69 = vmatprep.subr.mxu0 0.0
    %70 = vmatpush1.msra.mxu0 %v42
    %71 = vmatprep.subr.mxu0 0.0
    %72 = vmatpush1.msra.mxu0 %v43
    %73 = vmatprep.subr.mxu0 0.0
    %74 = vmatpush1.msra.mxu0 %v44
    %75 = vmatprep.subr.mxu0 0.0
    %76 = vmatpush1.msra.mxu0 %v45
    %77 = vmatprep.subr.mxu0 0.0
    %78 = vmatpush1.msra.mxu0 %v46
    %79 = vmatprep.subr.mxu0 0.0
    %80 = vmatpush1.msra.mxu0 0.0
    %81 = vmatprep.subr.mxu0 0.0
    %82 = vmatpush1.msra.mxu0 0.0
    %83 = vmatprep.subr.mxu0 0.0
    %84 = vmatpush1.msra.mxu0 0.0
    %85 = vmatprep.subr.mxu0 0.0
    %86 = vmatpush1.msra.mxu0 0.0
    %87 = vmatprep.subr.mxu0 0.0
    %88 = vmatpush1.msra.mxu0 0.0
    %89 = vmatprep.subr.mxu0 0.0
    %90 = vmatpush1.msra.mxu0 0.0
    %91 = vmatprep.subr.mxu0 0.0
    %92 = vmatpush1.msra.mxu0 0.0
    %93 = vmatprep.subr.mxu0 0.0
    %94 = vmatpush1.msra.mxu0 0.0
    %95 = vmatprep.subr.mxu0 0.0
    %96 = vmatpush1.msra.mxu0 0.0
    %97 = vmatprep.subr.mxu0 0.0
    %98 = vmatpush1.msra.mxu0 0.0
    %99 = vmatprep.subr.mxu0 0.0
    %100 = vmatpush1.msra.mxu0 0.0
    %101 = vmatprep.subr.mxu0 0.0
    %102 = vmatpush1.msra.mxu0 0.0
    %103 = vmatprep.subr.mxu0 0.0
    %104 = vmatpush1.msra.mxu0 0.0
    %105 = vmatprep.subr.mxu0 0.0
    %106 = vmatpush1.msra.mxu0 0.0
    %107 = vmatprep.subr.mxu0 0.0
    %108 = vmatpush1.msra.mxu0 0.0
    %109 = vmatprep.subr.mxu0 0.0
    %110 = vmatpush1.msra.mxu0 0.0
    %111 = vmatprep.mubr.f32.mxu0 0.0
    %112 = vmatmul.mubr.f32.gmra.mrb[0].mxu0 %v15
    %v113 = vpop.f32.mrb[0].mxu0
    %v114 = vadd.f32 0.0, %v113
    %v115 = vpop.f32.mrb[0].mxu0
    %116 = vmatprep.mubr.f32.mxu0 0.0
    %117 = vmatmul.mubr.f32.gmra.mrb[0].mxu0 %v16
    %v118 = vpop.f32.mrb[0].mxu0
    %v119 = vadd.f32 0.0, %v118
    %v120 = vpop.f32.mrb[0].mxu0
    %121 = vmatprep.mubr.f32.mxu0 0.0
    %122 = vmatmul.mubr.f32.gmra.mrb[0].mxu0 %v17
    %v123 = vpop.f32.mrb[0].mxu0
    %v124 = vadd.f32 0.0, %v123
    %v125 = vpop.f32.mrb[0].mxu0
    %126 = vmatprep.mubr.f32.mxu0 0.0
    %127 = vmatmul.mubr.f32.gmra.mrb[0].mxu0 %v18
    %v128 = vpop.f32.mrb[0].mxu0
    %v129 = vadd.f32 0.0, %v128
    %v130 = vpop.f32.mrb[0].mxu0
    %131 = vmatprep.mubr.f32.mxu0 0.0
    %132 = vmatmul.mubr.f32.gmra.mrb[0].mxu0 %v19
    %v133 = vpop.f32.mrb[0].mxu0
    %v134 = vadd.f32 0.0, %v133
    %v135 = vpop.f32.mrb[0].mxu0
    %136 = vmatprep.mubr.f32.mxu0 0.0
    %137 = vmatmul.mubr.f32.gmra.mrb[0].mxu0 %v20
    %v138 = vpop.f32.mrb[0].mxu0
    %v139 = vadd.f32 0.0, %v138
    %v140 = vpop.f32.mrb[0].mxu0
    %141 = vmatprep.mubr.f32.mxu0 0.0
    %142 = vmatmul.mubr.f32.gmra.mrb[0].mxu0 %v21
    %v143 = vpop.f32.mrb[0].mxu0
    %v144 = vadd.f32 0.0, %v143
    %v145 = vpop.f32.mrb[0].mxu0
    %146 = vmatprep.mubr.f32.mxu0 0.0
    %147 = vmatmul.mubr.f32.gmra.mrb[0].mxu0 %v22
    %v148 = vpop.f32.mrb[0].mxu0
    %v149 = vadd.f32 0.0, %v148
    %v150 = vpop.f32.mrb[0].mxu0
    %151 = vmatprep.mubr.f32.mxu0 0.0
    %152 = vmatmul.mubr.f32.gmra.mrb[0].mxu0 %v23
    %v153 = vpop.f32.mrb[0].mxu0
    %v154 = vadd.f32 0.0, %v153
    %v155 = vpop.f32.mrb[0].mxu0
    %156 = vmatprep.mubr.f32.mxu0 0.0
    %157 = vmatmul.mubr.f32.gmra.mrb[0].mxu0 %v24
    %v158 = vpop.f32.mrb[0].mxu0
    %v159 = vadd.f32 0.0, %v158
    %v160 = vpop.f32.mrb[0].mxu0
    %161 = vmatprep.mubr.f32.mxu0 0.0
    %162 = vmatmul.mubr.f32.gmra.mrb[0].mxu0 %v25
    %v163 = vpop.f32.mrb[0].mxu0
    %v164 = vadd.f32 0.0, %v163
    %v165 = vpop.f32.mrb[0].mxu0
    %166 = vmatprep.mubr.f32.mxu0 0.0
    %167 = vmatmul.mubr.f32.gmra.mrb[0].mxu0 %v26
    %v168 = vpop.f32.mrb[0].mxu0
    %v169 = vadd.f32 0.0, %v168
    %v170 = vpop.f32.mrb[0].mxu0
    %171 = vmatprep.mubr.f32.mxu0 0.0
    %172 = vmatmul.mubr.f32.gmra.mrb[0].mxu0 %v27
    %v173 = vpop.f32.mrb[0].mxu0
    %v174 = vadd.f32 0.0, %v173
    %v175 = vpop.f32.mrb[0].mxu0
    %176 = vmatprep.mubr.f32.mxu0 0.0
    %177 = vmatmul.mubr.f32.gmra.mrb[0].mxu0 %v28
    %v178 = vpop.f32.mrb[0].mxu0
    %v179 = vadd.f32 0.0, %v178
    %v180 = vpop.f32.mrb[0].mxu0
    %181 = vmatprep.mubr.f32.mxu0 0.0
    %182 = vmatmul.mubr.f32.gmra.mrb[0].mxu0 %v29
    %v183 = vpop.f32.mrb[0].mxu0
    %v184 = vadd.f32 0.0, %v183
    %v185 = vpop.f32.mrb[0].mxu0
    %186 = vmatprep.mubr.f32.mxu0 0.0
    %187 = vmatmul.mubr.f32.gmra.mrb[0].mxu0 %v30
    %v188 = vpop.f32.mrb[0].mxu0
    %v189 = vadd.f32 0.0, %v188
    %v190 = vpop.f32.mrb[0].mxu0
    %191 = vdwg.mxu0
    %v192 = vadd.f32 %v114, %v119
    %v193 = vadd.f32 %v192, %v124
    %v194 = vadd.f32 %v193, %v129
    %v195 = vadd.f32 %v194, %v134
    %v196 = vadd.f32 %v195, %v139
    %v197 = vadd.f32 %v196, %v144
    %v198 = vadd.f32 %v197, %v149
    %v199 = vadd.f32 %v198, %v154
    %v200 = vadd.f32 %v199, %v159
    %v201 = vadd.f32 %v200, %v164
    %v202 = vadd.f32 %v201, %v169
    %v203 = vadd.f32 %v202, %v174
    %v204 = vadd.f32 %v203, %v179
    %v205 = vadd.f32 %v204, %v184
    %v206 = vadd.f32 %v205, %v189
    %v207 = vrot.slane %v206, 4
    %v208 = vadd.f32 %v206, %v207
    %v209 = vrot.slane %v208, 2
    %v210 = vadd.f32 %v208, %v209
    %v211 = vrot.slane %v210, 1
    %v212 = vadd.f32 %v210, %v211
    %v213 = vmul.f32 %v212, 0.0078125
    %v214 = vsub.f32 %v114, %v213
    %v215 = vsub.f32 %v119, %v213
    %v216 = vsub.f32 %v124, %v213
    %v217 = vsub.f32 %v129, %v213
    %v218 = vsub.f32 %v134, %v213
    %v219 = vsub.f32 %v139, %v213
    %v220 = vsub.f32 %v144, %v213
    %v221 = vsub.f32 %v149, %v213
    %v222 = vsub.f32 %v154, %v213
    %v223 = vsub.f32 %v159, %v213
    %v224 = vsub.f32 %v164, %v213
    %v225 = vsub.f32 %v169, %v213
    %v226 = vsub.f32 %v174, %v213
    %v227 = vsub.f32 %v179, %v213
    %v228 = vsub.f32 %v184, %v213
    %v229 = vsub.f32 %v189, %v213
    %v230 = vmul.f32 %v214, %v214
    %v231 = vmul.f32 %v215, %v215
    %v232 = vmul.f32 %v216, %v216
    %v233 = vmul.f32 %v217, %v217
    %v234 = vmul.f32 %v218, %v218
    %v235 = vmul.f32 %v219, %v219
    %v236 = vmul.f32 %v220, %v220
    %v237 = vmul.f32 %v221, %v221
    %v238 = vmul.f32 %v222, %v222
    %v239 = vmul.f32 %v223, %v223
    %v240 = vmul.f32 %v224, %v224
    %v241 = vmul.f32 %v225, %v225
    %v242 = vmul.f32 %v226, %v226
    %v243 = vmul.f32 %v227, %v227
    %v244 = vmul.f32 %v228, %v228
    %v245 = vmul.f32 %v229, %v229
    %v246 = vadd.f32 %v230, %v231
    %v247 = vadd.f32 %v246, %v232
    %v248 = vadd.f32 %v247, %v233
    %v249 = vadd.f32 %v248, %v234
    %v250 = vadd.f32 %v249, %v235
    %v251 = vadd.f32 %v250, %v236
    %v252 = vadd.f32 %v251, %v237
    %v253 = vadd.f32 %v252, %v238
    %v254 = vadd.f32 %v253, %v239
    %v255 = vadd.f32 %v254, %v240
    %v256 = vadd.f32 %v255, %v241
    %v257 = vadd.f32 %v256, %v242
    %v258 = vadd.f32 %v257, %v243
    %v259 = vadd.f32 %v258, %v244
    %v260 = vadd.f32 %v259, %v245
    %v261 = vrot.slane %v260, 4
    %v262 = vadd.f32 %v260, %v261
    %v263 = vrot.slane %v262, 2
    %v264 = vadd.f32 %v262, %v263
    %v265 = vrot.slane %v264, 1
    %v266 = vadd.f32 %v264, %v265
    %v267 = vmul.f32 %v266, 0.0078125
    %v268 = vadd.f32 %v267, 1e-05
    %v269 = vrsqrt.pop %v268
    %v270 = vld [vmem:[%s2] sm:$0x1]
    %v271 = vld [vmem:[%s2 + $0x1] sm:$0x1]
    %v272 = vmul.f32 %v270, %v269
    %v273 = vlaneseq
    %v274 = vshrl.u32 %v273, 7
    %v275 = vsub.s32 0, %v274
    %v276 = vrot.slane %v272, %v275
    %v277 = vmul.f32 %v214, %v276
    %v278 = vmul.f32 %v215, %v276
    %v279 = vmul.f32 %v216, %v276
    %v280 = vmul.f32 %v217, %v276
    %v281 = vmul.f32 %v218, %v276
    %v282 = vmul.f32 %v219, %v276
    %v283 = vmul.f32 %v220, %v276
    %v284 = vmul.f32 %v221, %v276
    %v285 = vmul.f32 %v222, %v276
    %v286 = vmul.f32 %v223, %v276
    %v287 = vmul.f32 %v224, %v276
    %v288 = vmul.f32 %v225, %v276
    %v289 = vmul.f32 %v226, %v276
    %v290 = vmul.f32 %v227, %v276
    %v291 = vmul.f32 %v228, %v276
    %v292 = vmul.f32 %v229, %v276
    %v293 = vlaneseq
    %v294 = vshrl.u32 %v293, 7
    %v295 = vsub.s32 0, %v294
    %v296 = vrot.slane %v271, %v295
    %v297 = vadd.f32 %v277, %v296
    %v298 = vadd.f32 %v278, %v296
    %v299 = vadd.f32 %v279, %v296
    %v300 = vadd.f32 %v280, %v296
    %v301 = vadd.f32 %v281, %v296
    %v302 = vadd.f32 %v282, %v296
    %v303 = vadd.f32 %v283, %v296
    %v304 = vadd.f32 %v284, %v296
    %v305 = vadd.f32 %v285, %v296
    %v306 = vadd.f32 %v286, %v296
    %v307 = vadd.f32 %v287, %v296
    %v308 = vadd.f32 %v288, %v296
    %v309 = vadd.f32 %v289, %v296
    %v310 = vadd.f32 %v290, %v296
    %v311 = vadd.f32 %v291, %v296
    %v312 = vadd.f32 %v292, %v296
    %v313 = vmax.f32 %v297, 0.0
    %v314 = vmax.f32 %v298, 0.0
    %v315 = vmax.f32 %v299, 0.0
    %v316 = vmax.f32 %v300, 0.0
    %v317 = vmax.f32 %v301, 0.0
    %v318 = vmax.f32 %v302, 0.0
    %v319 = vmax.f32 %v303, 0.0
    %v320 = vmax.f32 %v304, 0.0
    %v321 = vmax.f32 %v305, 0.0
    %v322 = vmax.f32 %v306, 0.0
    %v323 = vmax.f32 %v307, 0.0
    %v324 = vmax.f32 %v308, 0.0
    %v325 = vmax.f32 %v309, 0.0
    %v326 = vmax.f32 %v310, 0.0
    %v327 = vmax.f32 %v311, 0.0
    %v328 = vmax.f32 %v312, 0.0
    %329 = vst [vmem:[#allocation2] sm:$0xff] %v313
    %330 = vst [vmem:[#allocation2 + $0x8] sm:$0xff] %v314
    %331 = vst [vmem:[#allocation2 + $0x10] sm:$0xff] %v315
    %332 = vst [vmem:[#allocation2 + $0x18] sm:$0xff] %v316
    %333 = vst [vmem:[#allocation2 + $0x20] sm:$0xff] %v317
    %334 = vst [vmem:[#allocation2 + $0x28] sm:$0xff] %v318
    %335 = vst [vmem:[#allocation2 + $0x30] sm:$0xff] %v319
    %336 = vst [vmem:[#allocation2 + $0x38] sm:$0xff] %v320
    %337 = vst [vmem:[#allocation2 + $0x40] sm:$0xff] %v321
    %338 = vst [vmem:[#allocation2 + $0x48] sm:$0xff] %v322
    %339 = vst [vmem:[#allocation2 + $0x50] sm:$0xff] %v323
    %340 = vst [vmem:[#allocation2 + $0x58] sm:$0xff] %v324
    %341 = vst [vmem:[#allocation2 + $0x60] sm:$0xff] %v325
    %342 = vst [vmem:[#allocation2 + $0x68] sm:$0xff] %v326
    %343 = vst [vmem:[#allocation2 + $0x70] sm:$0xff] %v327
    %344 = vst [vmem:[#allocation2 + $0x78] sm:$0xff] %v328
    // Predicated region
    $region14: #{conv_block_forward.1} parent=1 // pred_check
      _
    $region15: #{conv_block_forward.1} parent=1 // pred_check_branch
      %346 = sbr.rel (0) target = $region17
    $region16: #{conv_block_forward.1} parent=1 // pred_region
      %s348 = ssub.s32 2048, 2048
      %349 = vsyncadd [#allocation3], %s348
      %s350 = sshll.u32 [#allocation2], 4
      %s351 = int_to_ptr.vmem [resolvable:$true] %s350
      %356 = dma.vmem_to_hbm [thread:$0]  %s351, 2048, %s3, [#allocation3], 128, 128, 8
    $region17: #{conv_block_forward.1} parent=1 // pred_fallthru
      _
    // Predicated region
    $region18: #{conv_block_forward.1} parent=1 // pred_check
      _
    $region19: #{conv_block_forward.1} parent=1 // pred_check_branch
      %358 = sbr.rel (0) target = $region21
    $region20: #{conv_block_forward.1} parent=1 // pred_region
      %359 = dma.done [#allocation3], 2048
    $region21: #{conv_block_forward.1} parent=1 // pred_fallthru
      _
    %360 = vsyncpa [#allocation3], 1

</llo_original>
